<compile_context>
chip_gen: v7x
topology: tpu7x:2x2x1
jax: 0.10.0
libtpu: 0.0.40
codegen_flags: <defaults>
</compile_context>

<pallas_src>
import numpy as np
import jax
import jax.numpy as jnp
from jax.experimental import pallas as pl
from jax.experimental.pallas import tpu as pltpu


# ----------------------------------------------------------------------------
# Pallas kernel: single REN forward step (matches REN.forward semantics)
# ----------------------------------------------------------------------------
def ren_step_kernel(
    decay_ref,   # (1,)          SMEM   decay_rate ** t
    a_ref,       # (B, n+m)      VMEM   [x | u]
    W_T_ref,     # (n+m, n+p+l)  VMEM   K-major fused weights
    b_all_ref,   # (1, n+p+l)    VMEM   [Einv@bx | bu | bv/Lambda]
    S_all_ref,   # (l, n+p+l)    VMEM   [(Einv@B1).T | 0 | D11.T/Lambda]
    out_ref,     # (B, n+p)      VMEM   [x_next | y]
):
    a = a_ref[...]
    decay = decay_ref[0]
    l = S_all_ref.shape[0]
    col0 = out_ref.shape[1]                       # n + p

    # One fused matmul: first n+p lanes = affine base of [x_next | y],
    # last l lanes = (C1 x + D12 u + decay*bv) / Lambda.
    acc = (
        jnp.dot(a, W_T_ref[...], preferred_element_type=jnp.float32)
        + decay * b_all_ref[...]
    )                                             # (B, n+p+l)

    S_all = S_all_ref[...]                        # hoisted row source

    # Serial equilibrium recursion (D11 strictly lower triangular, so lane
    # col0+i is final once steps 0..i-1 have scattered their contributions).
    for i in range(l):                            # static, small l
        col = col0 + i
        t_i = jnp.tanh(acc[:, col:col + 1])       # (B,1) static lane slice
        acc = acc + t_i * S_all[i:i + 1, :]       # single fused scatter (VPU)

    out_ref[...] = acc[:, :col0]                  # [x_next | y]


def ren_forward(u, x, t, P):
    """Pallas-backed single REN step. Returns (y, x_next). Batch-capable."""
    n = P["F"].shape[0]
    p = P["C2"].shape[0]
    l = P["C1"].shape[0]
    m = P["D12"].shape[1]
    assert n + m <= 128 and n + p + l <= 128, "single-vreg-lane assumption broken"
    assert l <= 64, "static unroll assumption broken"

    decay = jnp.array([0.95 ** t], dtype=jnp.float32)          # (1,) SMEM
    a = jnp.concatenate([x, u], axis=1).astype(jnp.float32)    # (B, n+m)
    B = a.shape[0]

    vmem = pl.BlockSpec(memory_space=pltpu.MemorySpace.VMEM)
    smem = pl.BlockSpec(memory_space=pltpu.MemorySpace.SMEM)

    out = pl.pallas_call(
        ren_step_kernel,
        out_shape=jax.ShapeDtypeStruct((B, n + p), jnp.float32),
        in_specs=[smem, vmem, vmem, vmem, vmem],
        out_specs=vmem,
    )(decay, a, P["W_all_T"], P["b_all"], P["S_all"])

    x_next = out[:, :n]
    y = out[:, n:]
    return y, x_next


# ----------------------------------------------------------------------------
# Pallas kernel: T-step rollout with weights VMEM-resident (biggest perf lever)
# ----------------------------------------------------------------------------
def ren_rollout_kernel(
    decays_ref,  # (T,)          SMEM   decay_rate ** (t0 + step)
    x0_ref,      # (1, n)        VMEM
    useq_ref,    # (T, m)        VMEM
    WxT_ref,     # (n, n+p+l)    VMEM   K-major weights for x
    WuT_ref,     # (m, n+p+l)    VMEM   K-major weights for u
    b_all_ref,   # (1, n+p+l)    VMEM
    S_all_ref,   # (l, n+p+l)    VMEM
    yseq_ref,    # (T, p)        VMEM   output y per step
    xT_ref,      # (1, n)        VMEM   final state
):
    n = x0_ref.shape[1]
    p = yseq_ref.shape[1]
    l = S_all_ref.shape[0]
    col0 = n + p
    T = yseq_ref.shape[0]

    # Weights stay VMEM/vreg resident for the whole rollout.
    WxT = WxT_ref[...]
    WuT = WuT_ref[...]
    b_all = b_all_ref[...]
    S_all = S_all_ref[...]

    def step(t, x):
        decay = decays_ref[t]
        u_t = useq_ref[pl.ds(t, 1), :]                         # (1, m)
        acc = (
            jnp.dot(x, WxT, preferred_element_type=jnp.float32)
            + jnp.dot(u_t, WuT, preferred_element_type=jnp.float32)
            + decay * b_all
        )                                                      # (1, n+p+l)
        for i in range(l):                                     # static unroll
            col = col0 + i
            t_i = jnp.tanh(acc[:, col:col + 1])
            acc = acc + t_i * S_all[i:i + 1, :]
        yseq_ref[pl.ds(t, 1), :] = acc[:, n:col0]
        return acc[:, :n]

    x_final = jax.lax.fori_loop(0, T, step, x0_ref[...])
    xT_ref[...] = x_final


def ren_rollout(u_seq, x0, t0, P):
    """Run T REN steps inside one pallas_call. Returns (y_seq (T,p), x_T (1,n))."""
    n = P["F"].shape[0]
    p = P["C2"].shape[0]
    l = P["C1"].shape[0]
    m = P["D12"].shape[1]
    T = u_seq.shape[0]
    assert n + m <= 128 and n + p + l <= 128 and l <= 64

    decays = (0.95 ** (t0 + jnp.arange(T))).astype(jnp.float32)  # (T,) SMEM

    vmem = pl.BlockSpec(memory_space=pltpu.MemorySpace.VMEM)
    smem = pl.BlockSpec(memory_space=pltpu.MemorySpace.SMEM)

    y_seq, x_T = pl.pallas_call(
        ren_rollout_kernel,
        out_shape=(
            jax.ShapeDtypeStruct((T, p), jnp.float32),
            jax.ShapeDtypeStruct((1, n), jnp.float32),
        ),
        in_specs=[smem, vmem, vmem, vmem, vmem, vmem, vmem],
        out_specs=(vmem, vmem),
    )(decays, x0.astype(jnp.float32), u_seq.astype(jnp.float32),
      P["Wx_T"], P["Wu_T"], P["b_all"], P["S_all"])
    return y_seq, x_T


# ----------------------------------------------------------------------------
# Parameter construction (REN.set_param) — plain JAX glue (one-time cost)
# ----------------------------------------------------------------------------
def init_raw_params(key, n, l, m, p, std=0.01):
    mn, diff = min(p, m), abs(p - m)
    ks = jax.random.split(key, 8)
    return dict(
        X=jax.random.normal(ks[0], (2 * n + l, 2 * n + l), jnp.float32) * std,
        Y=jax.random.normal(ks[1], (n, n), jnp.float32) * std,
        Z3=jax.random.normal(ks[2], (diff, mn), jnp.float32) * std,
        X3=jax.random.normal(ks[3], (mn, mn), jnp.float32) * std,
        Y3=jax.random.normal(ks[4], (mn, mn), jnp.float32) * std,
        D12=jax.random.normal(ks[5], (l, m), jnp.float32),      # no std scaling
        B2=jax.random.normal(ks[6], (n, m), jnp.float32) * std,
        C2=jax.random.normal(ks[7], (p, n), jnp.float32) * std,
        bx=jnp.zeros((n,), jnp.float32),                        # bias=False
        bv=jnp.zeros((l,), jnp.float32),
        bu=jnp.zeros((p,), jnp.float32),
    )


def set_param(raw, n, l, m, p, gamma=0.3, eps_reg=0.001, mode="l2stable"):
    # TODO(synk): only the 'l2stable' mode of _set_mode is implemented; the
    # user-supplied-(Q,R,S) validation branch is one-time host glue anyway.
    assert mode == "l2stable"
    Q = -(1.0 / gamma) * jnp.eye(p, dtype=jnp.float32)
    R = gamma * jnp.eye(m, dtype=jnp.float32)
    S = jnp.zeros((m, p), jnp.float32)

    X3, Y3, Z3 = raw["X3"], raw["Y3"], raw["Z3"]
    X, Y = raw["X"], raw["Y"]
    D12, B2, C2 = raw["D12"], raw["B2"], raw["C2"]

    mn = min(p, m)
    M = X3.T @ X3 + Y3 - Y3.T + Z3.T @ Z3 + eps_reg * jnp.eye(mn, dtype=jnp.float32)
    if p >= m:
        Im = jnp.eye(m, dtype=jnp.float32)
        inv_IM = jnp.linalg.inv(Im + M)
        N = jnp.vstack(((Im - M) @ inv_IM, -2.0 * Z3 @ inv_IM))
    else:
        Ip = jnp.eye(p, dtype=jnp.float32)
        inv_IM = jnp.linalg.inv(Ip + M)
        N = jnp.hstack((inv_IM @ (Ip - M), -2.0 * inv_IM @ Z3.T))

    Lq = jnp.linalg.cholesky(-Q).T
    Lr = jnp.linalg.cholesky(R - S @ jnp.linalg.inv(Q) @ S.T).T
    D22 = -jnp.linalg.inv(Q) @ S.T + jnp.linalg.inv(Lq) @ N @ Lr

    R_cal = R + S @ D22 + (S @ D22).T + D22.T @ Q @ D22
    R_cal_inv = jnp.linalg.inv(R_cal)

    D21 = jnp.zeros((p, l), jnp.float32)  # stays zero, as in the PyTorch module
    C2_cal = ((D22.T @ Q + S) @ C2).T
    D21_cal = ((D22.T @ Q + S) @ D21).T - D12

    vec_r = jnp.concatenate([C2_cal, D21_cal, B2], axis=0)
    psi_r = vec_r @ R_cal_inv @ vec_r.T
    vec_q = jnp.concatenate([C2.T, D21.T, jnp.zeros((n, p), jnp.float32)], axis=0)
    psi_q = vec_q @ Q @ vec_q.T

    H = X.T @ X + eps_reg * jnp.eye(2 * n + l, dtype=jnp.float32) + psi_r - psi_q
    H11 = H[:n, :n]
    H21 = H[n:n + l, :n]
    H22 = H[n:n + l, n:n + l]
    H31 = H[n + l:, :n]
    H32 = H[n + l:, n:n + l]
    H33 = H[n + l:, n + l:]

    P_cal = H33
    F_mat = H31
    B1 = H32
    E = 0.5 * (H11 + P_cal + Y - Y.T)
    Lam = 0.5 * jnp.diag(H22)
    D11 = -jnp.tril(H22, k=-1)
    C1 = -H21

    # ----- host-side precompute for the fused Pallas kernels ----------------
    Einv = jnp.linalg.inv(E)
    Fp = Einv @ F_mat                       # Einv folded into state weights
    B1p = Einv @ B1
    B2p = Einv @ B2
    bxp = Einv @ raw["bx"]
    inv_Lam = (1.0 / Lam).astype(jnp.float32)

    # 1/Lambda folded into the pre-activation weights.
    W_pre_s = inv_Lam[:, None] * jnp.concatenate([C1, D12], axis=1)   # (l, n+m)
    W_so = jnp.concatenate(
        [jnp.concatenate([Fp, B2p], axis=1),                          # (n, n+m)
         jnp.concatenate([C2, D22], axis=1)],                         # (p, n+m)
        axis=0,
    )                                                                 # (n+p, n+m)
    W_all = jnp.concatenate([W_so, W_pre_s], axis=0)                  # (n+p+l, n+m)
    W_all_T = jnp.asarray(W_all.T, jnp.float32)                       # (n+m, n+p+l)
    Wx_T = W_all_T[:n, :]                                             # (n, n+p+l)
    Wu_T = W_all_T[n:, :]                                             # (m, n+p+l)

    b_all = jnp.concatenate([bxp, raw["bu"], inv_Lam * raw["bv"]]).reshape(1, -1)

    # Merged scatter matrix: [ (Einv@B1).T | 0_p | D11.T / Lambda ]  (l, n+p+l)
    S_all = jnp.concatenate(
        [B1p.T, jnp.zeros((l, p), jnp.float32), D11.T * inv_Lam[None, :]], axis=1
    ).astype(jnp.float32)

    return dict(
        # original-form params (used by the pure-JAX reference)
        F=F_mat, B1=B1, B2=B2, E=E, Einv=Einv,
        Lambda=Lam, C1=C1, D11=D11, D12=D12,
        C2=C2, D21=D21, D22=D22,
        bx=raw["bx"], bv=raw["bv"], bu=raw["bu"],
        # fused/precomputed params (used by the Pallas kernels)
        W_all_T=W_all_T, Wx_T=Wx_T, Wu_T=Wu_T, b_all=b_all, S_all=S_all,
    )


# ----------------------------------------------------------------------------
# Pure-JAX reference (mirrors the PyTorch forward) for validation
# ----------------------------------------------------------------------------
def ren_forward_ref(u, x, decay, P):
    l = P["C1"].shape[0]
    eps = jnp.zeros((l,), jnp.float32)
    for i in range(l):
        v = (
            jnp.dot(x[0], P["C1"][i])
            + jnp.dot(eps, P["D11"][i])
            + jnp.dot(u[0], P["D12"][i])
            + decay * P["bv"][i]
        )
        eps = eps.at[i].set(jnp.tanh(v / P["Lambda"][i]))
    E_x = x @ P["F"].T + eps @ P["B1"].T + u @ P["B2"].T + decay * P["bx"]
    x_next = E_x @ P["Einv"].T
    y = x @ P["C2"].T + eps @ P["D21"].T + u @ P["D22"].T + decay * P["bu"]
    return y, x_next


# ----------------------------------------------------------------------------
if __name__ == "__main__":
    n, l, m, p = 8, 8, 4, 8   # state, equilibrium units, input dim, output dim
    key = jax.random.PRNGKey(0)
    kparam, ku, kx, kseq = jax.random.split(key, 4)

    raw = init_raw_params(kparam, n, l, m, p)
    P = set_param(raw, n, l, m, p, gamma=0.3)

    # --- single-step forward (matches REN.forward) ---------------------------
    u = jax.random.normal(ku, (1, m), jnp.float32)
    x = jax.random.normal(kx, (1, n), jnp.float32)
    t = 3

    y, x_next = ren_forward(u, x, t, P)
    jax.block_until_ready((y, x_next))

    y_ref, x_ref = ren_forward_ref(u, x, 0.95 ** t, P)
    assert y.shape == (1, p) and x_next.shape == (1, n)
    assert np.allclose(np.asarray(y), np.asarray(y_ref), rtol=1e-3, atol=1e-3)
    assert np.allclose(np.asarray(x_next), np.asarray(x_ref), rtol=1e-3, atol=1e-3)

    # --- in-kernel T-step rollout (weights stay VMEM-resident) ---------------
    T = 6
    t0 = 0
    u_seq = jax.random.normal(kseq, (T, m), jnp.float32)
    x0 = jax.random.normal(kx, (1, n), jnp.float32)

    y_seq, x_T = ren_rollout(u_seq, x0, t0, P)
    jax.block_until_ready((y_seq, x_T))

    # reference rollout: iterate the single-step reference
    x_r = x0
    y_rows = []
    for s in range(T):
        y_r, x_r = ren_forward_ref(u_seq[s:s + 1], x_r, 0.95 ** (t0 + s), P)
        y_rows.append(y_r[0])
    y_seq_ref = jnp.stack(y_rows, axis=0)

    assert y_seq.shape == (T, p) and x_T.shape == (1, n)
    assert np.allclose(np.asarray(y_seq), np.asarray(y_seq_ref), rtol=1e-3, atol=1e-3)
    assert np.allclose(np.asarray(x_T), np.asarray(x_r), rtol=1e-3, atol=1e-3)

    print("KERNEL_OK")
</pallas_src>

<mosaic_0001>
module attributes {stable_mosaic.version = 11 : i64} {
  func.func @ren_step_kernel(%arg0: memref<1xf32, #tpu.memory_space<smem>>, %arg1: memref<1x12xf32, #tpu.memory_space<vmem>>, %arg2: memref<12x24xf32, #tpu.memory_space<vmem>>, %arg3: memref<1x24xf32, #tpu.memory_space<vmem>>, %arg4: memref<8x24xf32, #tpu.memory_space<vmem>>, %arg5: memref<1x16xf32, #tpu.memory_space<vmem>>) attributes {dimension_semantics = [], scalar_prefetch = 0 : i64, scratch_operands = 0 : i64, tpu.core_type = #tpu.core_type<tc>} {
    %c0 = arith.constant 0 : index
    %c0_0 = arith.constant 0 : index
    %0 = vector.load %arg1[%c0, %c0_0] : memref<1x12xf32, #tpu.memory_space<vmem>>, vector<1x12xf32>
    %c0_1 = arith.constant 0 : index
    %1 = memref.load %arg0[%c0_1] : memref<1xf32, #tpu.memory_space<smem>>
    %c0_2 = arith.constant 0 : index
    %c0_3 = arith.constant 0 : index
    %2 = vector.load %arg2[%c0_2, %c0_3] : memref<12x24xf32, #tpu.memory_space<vmem>>, vector<12x24xf32>
    %cst = arith.constant dense<0.000000e+00> : vector<1x24xf32>
    %3 = tpu.matmul %0, %2, %cst {dimension_numbers = #tpu.dot_dimension_numbers<[1], [0], [0], [1], [0, 0, 1, 1], [], []>} : vector<1x12xf32>, vector<12x24xf32>, vector<1x24xf32> -> vector<1x24xf32>
    %c0_4 = arith.constant 0 : index
    %c0_5 = arith.constant 0 : index
    %4 = vector.load %arg3[%c0_4, %c0_5] : memref<1x24xf32, #tpu.memory_space<vmem>>, vector<1x24xf32>
    %5 = vector.broadcast %1 : f32 to vector<1x24xf32>
    %6 = arith.mulf %5, %4 : vector<1x24xf32>
    %7 = arith.addf %3, %6 : vector<1x24xf32>
    %c0_6 = arith.constant 0 : index
    %c0_7 = arith.constant 0 : index
    %8 = vector.load %arg4[%c0_6, %c0_7] : memref<8x24xf32, #tpu.memory_space<vmem>>, vector<8x24xf32>
    %9 = vector.extract_strided_slice %7 {offsets = [0, 16], sizes = [1, 1], strides = [1, 1]} : vector<1x24xf32> to vector<1x1xf32>
    %10 = math.tanh %9 : vector<1x1xf32>
    %11 = vector.extract_strided_slice %8 {offsets = [0, 0], sizes = [1, 24], strides = [1, 1]} : vector<8x24xf32> to vector<1x24xf32>
    %12 = vector.broadcast %10 : vector<1x1xf32> to vector<1x24xf32>
    %13 = arith.mulf %12, %11 : vector<1x24xf32>
    %14 = arith.addf %7, %13 : vector<1x24xf32>
    %15 = vector.extract_strided_slice %14 {offsets = [0, 17], sizes = [1, 1], strides = [1, 1]} : vector<1x24xf32> to vector<1x1xf32>
    %16 = math.tanh %15 : vector<1x1xf32>
    %17 = vector.extract_strided_slice %8 {offsets = [1, 0], sizes = [1, 24], strides = [1, 1]} : vector<8x24xf32> to vector<1x24xf32>
    %18 = vector.broadcast %16 : vector<1x1xf32> to vector<1x24xf32>
    %19 = arith.mulf %18, %17 : vector<1x24xf32>
    %20 = arith.addf %14, %19 : vector<1x24xf32>
    %21 = vector.extract_strided_slice %20 {offsets = [0, 18], sizes = [1, 1], strides = [1, 1]} : vector<1x24xf32> to vector<1x1xf32>
    %22 = math.tanh %21 : vector<1x1xf32>
    %23 = vector.extract_strided_slice %8 {offsets = [2, 0], sizes = [1, 24], strides = [1, 1]} : vector<8x24xf32> to vector<1x24xf32>
    %24 = vector.broadcast %22 : vector<1x1xf32> to vector<1x24xf32>
    %25 = arith.mulf %24, %23 : vector<1x24xf32>
    %26 = arith.addf %20, %25 : vector<1x24xf32>
    %27 = vector.extract_strided_slice %26 {offsets = [0, 19], sizes = [1, 1], strides = [1, 1]} : vector<1x24xf32> to vector<1x1xf32>
    %28 = math.tanh %27 : vector<1x1xf32>
    %29 = vector.extract_strided_slice %8 {offsets = [3, 0], sizes = [1, 24], strides = [1, 1]} : vector<8x24xf32> to vector<1x24xf32>
    %30 = vector.broadcast %28 : vector<1x1xf32> to vector<1x24xf32>
    %31 = arith.mulf %30, %29 : vector<1x24xf32>
    %32 = arith.addf %26, %31 : vector<1x24xf32>
    %33 = vector.extract_strided_slice %32 {offsets = [0, 20], sizes = [1, 1], strides = [1, 1]} : vector<1x24xf32> to vector<1x1xf32>
    %34 = math.tanh %33 : vector<1x1xf32>
    %35 = vector.extract_strided_slice %8 {offsets = [4, 0], sizes = [1, 24], strides = [1, 1]} : vector<8x24xf32> to vector<1x24xf32>
    %36 = vector.broadcast %34 : vector<1x1xf32> to vector<1x24xf32>
    %37 = arith.mulf %36, %35 : vector<1x24xf32>
    %38 = arith.addf %32, %37 : vector<1x24xf32>
    %39 = vector.extract_strided_slice %38 {offsets = [0, 21], sizes = [1, 1], strides = [1, 1]} : vector<1x24xf32> to vector<1x1xf32>
    %40 = math.tanh %39 : vector<1x1xf32>
    %41 = vector.extract_strided_slice %8 {offsets = [5, 0], sizes = [1, 24], strides = [1, 1]} : vector<8x24xf32> to vector<1x24xf32>
    %42 = vector.broadcast %40 : vector<1x1xf32> to vector<1x24xf32>
    %43 = arith.mulf %42, %41 : vector<1x24xf32>
    %44 = arith.addf %38, %43 : vector<1x24xf32>
    %45 = vector.extract_strided_slice %44 {offsets = [0, 22], sizes = [1, 1], strides = [1, 1]} : vector<1x24xf32> to vector<1x1xf32>
    %46 = math.tanh %45 : vector<1x1xf32>
    %47 = vector.extract_strided_slice %8 {offsets = [6, 0], sizes = [1, 24], strides = [1, 1]} : vector<8x24xf32> to vector<1x24xf32>
    %48 = vector.broadcast %46 : vector<1x1xf32> to vector<1x24xf32>
    %49 = arith.mulf %48, %47 : vector<1x24xf32>
    %50 = arith.addf %44, %49 : vector<1x24xf32>
    %51 = vector.extract_strided_slice %50 {offsets = [0, 23], sizes = [1, 1], strides = [1, 1]} : vector<1x24xf32> to vector<1x1xf32>
    %52 = math.tanh %51 : vector<1x1xf32>
    %53 = vector.extract_strided_slice %8 {offsets = [7, 0], sizes = [1, 24], strides = [1, 1]} : vector<8x24xf32> to vector<1x24xf32>
    %54 = vector.broadcast %52 : vector<1x1xf32> to vector<1x24xf32>
    %55 = arith.mulf %54, %53 : vector<1x24xf32>
    %56 = arith.addf %50, %55 : vector<1x24xf32>
    %57 = vector.extract_strided_slice %56 {offsets = [0, 0], sizes = [1, 16], strides = [1, 1]} : vector<1x24xf32> to vector<1x16xf32>
    %c0_8 = arith.constant 0 : index
    %c0_9 = arith.constant 0 : index
    %58 = vector.load %arg5[%c0_8, %c0_9] : memref<1x16xf32, #tpu.memory_space<vmem>>, vector<1x16xf32>
    tpu.vector_store %arg5[%c0_8, %c0_9], %57 {strides = array<i32>} : memref<1x16xf32, #tpu.memory_space<vmem>>, vector<1x16xf32>,
    return
  }
}

</mosaic_0001>

<llo_original>
// kernel: tpu_custom_call.1
$region0: #{tpu_custom_call.1}
  #allocation0 [shape = 'u32[]', space=smem, size = 0x4, offset = 0x4, fixed_abs, tag = 'smem constant byte address 0x4 - core index']
  #allocation1 [shape = 'u32[144,128]{1,0:T(1,128)}', space=vmem, size = 0x12000, scoped, tag = 'internal scratch']
  #allocation2 [shape = 'f32[1]{0:T(128)S(6)}', space=smem, size = 0x200, scoped, tag = 'scoped memory for tpu_custom_call.1']
  %s0 = inlined_call_operand.<no memory space> [shape: f32[1], index: 0, kind: input, shape index: {}]
  %s1 = inlined_call_operand.vmem [shape: f32[1,12], index: 1, kind: input, shape index: {}]
  %s2 = inlined_call_operand.hbm [shape: f32[12,24], index: 2, kind: input, shape index: {}]
  %s3 = inlined_call_operand.vmem [shape: f32[1,24], index: 3, kind: input, shape index: {}]
  %s4 = inlined_call_operand.vmem [shape: f32[8,24], index: 4, kind: input, shape index: {}]
  %s5 = inlined_call_operand.hbm [shape: f32[1,16], index: 5, kind: output, shape index: {}]
  %s6 = sld [smem:[#allocation0]]
  $region34: #{tpu_custom_call.1} parent=0
    _
  %s8 = ssub.s32 1, %s6
  %s9 = scalar_select 0, %s8, %s6
  %10 = sst [smem:[#allocation2]] %s0
  $region1: #{tpu_custom_call.1} parent=0
    #allocation3 [shape = 'u8[8192]{0}', space=vmem, size = 0x2000, scoped, tag = 'input window, operand 2, single buffered']
    #allocation4 [shape = 's32[1]{0}', space=sflag, size = 0x4, scoped, tag = 'scoped memory for tpu_custom_call.1']
    #allocation5 [shape = 's32[1]{0}', space=sflag, size = 0x4, scoped, tag = 'scoped memory for tpu_custom_call.1']
    #allocation6 [shape = 'u8[512]{0}', space=vmem, size = 0x400, scoped, tag = 'output window, operand 0, single buffered']
    %11 = vsyncpa [#allocation4], 0
    %12 = vsyncpa [#allocation5], 0
    // Predicated region
    $region2: #{tpu_custom_call.1} parent=1 // pred_check
      _
    $region3: #{tpu_custom_call.1} parent=1 // pred_check_branch
      %14 = sbr.rel (0) target = $region5
    $region4: #{tpu_custom_call.1} parent=1 // pred_region
      _
    $region5: #{tpu_custom_call.1} parent=1 // pred_fallthru
      _
    // Predicated region
    $region6: #{tpu_custom_call.1} parent=1 // pred_check
      _
    $region7: #{tpu_custom_call.1} parent=1 // pred_check_branch
      %16 = sbr.rel (0) target = $region9
    $region8: #{tpu_custom_call.1} parent=1 // pred_region
      _
    $region9: #{tpu_custom_call.1} parent=1 // pred_fallthru
      _
    // Predicated region
    $region10: #{tpu_custom_call.1} parent=1 // pred_check
      _
    $region11: #{tpu_custom_call.1} parent=1 // pred_check_branch
      %18 = sbr.rel (0) target = $region13
    $region12: #{tpu_custom_call.1} parent=1 // pred_region
      %s20 = ssub.s32 256, 256
      %21 = vsyncadd [#allocation4], %s20
      %s22 = sshll.u32 [#allocation3], 4
      %s23 = int_to_ptr.vmem [resolvable:$true] %s22
      %28 = dma.hbm_to_vmem [thread:$0]  %s2, 256, %s23, [#allocation4], 128, 128, 8
    $region13: #{tpu_custom_call.1} parent=1 // pred_fallthru
      _
    // Predicated region
    $region14: #{tpu_custom_call.1} parent=1 // pred_check
      _
    $region15: #{tpu_custom_call.1} parent=1 // pred_check_branch
      %30 = sbr.rel (0) target = $region17
    $region16: #{tpu_custom_call.1} parent=1 // pred_region
      _
    $region17: #{tpu_custom_call.1} parent=1 // pred_fallthru
      _
    // Predicated region
    $region18: #{tpu_custom_call.1} parent=1 // pred_check
      _
    $region19: #{tpu_custom_call.1} parent=1 // pred_check_branch
      %32 = sbr.rel (0) target = $region21
    $region20: #{tpu_custom_call.1} parent=1 // pred_region
      _
    $region21: #{tpu_custom_call.1} parent=1 // pred_fallthru
      _
    // Predicated region
    $region22: #{tpu_custom_call.1} parent=1 // pred_check
      _
    $region23: #{tpu_custom_call.1} parent=1 // pred_check_branch
      %34 = sbr.rel (0) target = $region25
    $region24: #{tpu_custom_call.1} parent=1 // pred_region
      %35 = dma.done [#allocation4], 256
    $region25: #{tpu_custom_call.1} parent=1 // pred_fallthru
      _
    %v36 = vld [vmem:[%s1] sm:$0x1]
    %s37 = sld [smem:[#allocation2]]
    %v38 = vld [vmem:[#allocation3] sm:$0xff]
    %v39 = vld [vmem:[#allocation3 + $0x8] sm:$0xf]
    %v40 = vld [vmem:[%s3] sm:$0x1]
    %v41 = vstv %s37
    %v42 = vmul.f32 %v41, %v40
    %vm43 = vcmask 97280
    %v45 = vsel %vm43, %v36, 0
    %vm47 = vcmask 1043456
    %v49 = vsel %vm47, %v39, 0
    %51 = vmatprep.subr.mxu0 0.0
    %52 = vmatpush1.msra.mxu0 %v38
    %53 = vmatprep.subr.mxu0 0.0
    %54 = vmatpush1.msra.mxu0 %v49
    %55 = vmatprep.subr.mxu0 0.0
    %56 = vmatpush1.msra.mxu0 0.0
    %57 = vmatprep.subr.mxu0 0.0
    %58 = vmatpush1.msra.mxu0 0.0
    %59 = vmatprep.subr.mxu0 0.0
    %60 = vmatpush1.msra.mxu0 0.0
    %61 = vmatprep.subr.mxu0 0.0
    %62 = vmatpush1.msra.mxu0 0.0
    %63 = vmatprep.subr.mxu0 0.0
    %64 = vmatpush1.msra.mxu0 0.0
    %65 = vmatprep.subr.mxu0 0.0
    %66 = vmatpush1.msra.mxu0 0.0
    %67 = vmatprep.subr.mxu0 0.0
    %68 = vmatpush1.msra.mxu0 0.0
    %69 = vmatprep.subr.mxu0 0.0
    %70 = vmatpush1.msra.mxu0 0.0
    %71 = vmatprep.subr.mxu0 0.0
    %72 = vmatpush1.msra.mxu0 0.0
    %73 = vmatprep.subr.mxu0 0.0
    %74 = vmatpush1.msra.mxu0 0.0
    %75 = vmatprep.subr.mxu0 0.0
    %76 = vmatpush1.msra.mxu0 0.0
    %77 = vmatprep.subr.mxu0 0.0
    %78 = vmatpush1.msra.mxu0 0.0
    %79 = vmatprep.subr.mxu0 0.0
    %80 = vmatpush1.msra.mxu0 0.0
    %81 = vmatprep.subr.mxu0 0.0
    %82 = vmatpush1.msra.mxu0 0.0
    %83 = vmatprep.subr.mxu0 0.0
    %84 = vmatpush1.msra.mxu0 0.0
    %85 = vmatprep.subr.mxu0 0.0
    %86 = vmatpush1.msra.mxu0 0.0
    %87 = vmatprep.subr.mxu0 0.0
    %88 = vmatpush1.msra.mxu0 0.0
    %89 = vmatprep.subr.mxu0 0.0
    %90 = vmatpush1.msra.mxu0 0.0
    %91 = vmatprep.subr.mxu0 0.0
    %92 = vmatpush1.msra.mxu0 0.0
    %93 = vmatprep.subr.mxu0 0.0
    %94 = vmatpush1.msra.mxu0 0.0
    %95 = vmatprep.subr.mxu0 0.0
    %96 = vmatpush1.msra.mxu0 0.0
    %97 = vmatprep.subr.mxu0 0.0
    %98 = vmatpush1.msra.mxu0 0.0
    %99 = vmatprep.subr.mxu0 0.0
    %100 = vmatpush1.msra.mxu0 0.0
    %101 = vmatprep.subr.mxu0 0.0
    %102 = vmatpush1.msra.mxu0 0.0
    %103 = vmatprep.subr.mxu0 0.0
    %104 = vmatpush1.msra.mxu0 0.0
    %105 = vmatprep.subr.mxu0 0.0
    %106 = vmatpush1.msra.mxu0 0.0
    %107 = vmatprep.subr.mxu0 0.0
    %108 = vmatpush1.msra.mxu0 0.0
    %109 = vmatprep.subr.mxu0 0.0
    %110 = vmatpush1.msra.mxu0 0.0
    %111 = vmatprep.subr.mxu0 0.0
    %112 = vmatpush1.msra.mxu0 0.0
    %113 = vmatprep.subr.mxu0 0.0
    %114 = vmatpush1.msra.mxu0 0.0
    %115 = vmatprep.mubr.f32.mxu0 0.0
    %116 = vmatmul.mubr.f32.gmra.mrb[0].mxu0 %v45
    %v117 = vpop.f32.mrb[0].mxu0
    %v118 = vadd.f32 %v42, %v117
    %v119 = vpop.f32.mrb[0].mxu0
    %120 = vdwg.mxu0
    %v121 = vld [vmem:[%s4] sm:$0xff]
    %v122 = vtanh.pop %v118
    %124 = vset.pattern.permute.xlu0 16
    %125 = vperm.xlu0 %124, %v122
    %v126 = vpop.permute.xlu0 %125
    %v128 = vmul.f32 %v126, %v121
    %v129 = vadd.f32 %v118, %v128
    %v130 = vtanh.pop %v129
    %132 = vset.pattern.permute.xlu0 17
    %133 = vperm.xlu0 %132, %v130
    %v134 = vpop.permute.xlu0 %133
    %v137 = vrot.slane %v121, 1
    %v139 = vmul.f32 %v134, %v137
    %v140 = vadd.f32 %v129, %v139
    %v141 = vtanh.pop %v140
    %143 = vset.pattern.permute.xlu0 18
    %144 = vperm.xlu0 %143, %v141
    %v145 = vpop.permute.xlu0 %144
    %v147 = vrot.slane %v121, 2
    %v149 = vmul.f32 %v145, %v147
    %v150 = vadd.f32 %v140, %v149
    %v151 = vtanh.pop %v150
    %153 = vset.pattern.permute.xlu0 19
    %154 = vperm.xlu0 %153, %v151
    %v155 = vpop.permute.xlu0 %154
    %v157 = vrot.slane %v121, 3
    %v159 = vmul.f32 %v155, %v157
    %v160 = vadd.f32 %v150, %v159
    %v161 = vtanh.pop %v160
    %163 = vset.pattern.permute.xlu0 20
    %164 = vperm.xlu0 %163, %v161
    %v165 = vpop.permute.xlu0 %164
    %v167 = vrot.slane %v121, 4
    %v169 = vmul.f32 %v165, %v167
    %v170 = vadd.f32 %v160, %v169
    %v171 = vtanh.pop %v170
    %173 = vset.pattern.permute.xlu0 21
    %174 = vperm.xlu0 %173, %v171
    %v175 = vpop.permute.xlu0 %174
    %v177 = vrot.slane %v121, 5
    %v179 = vmul.f32 %v175, %v177
    %v180 = vadd.f32 %v170, %v179
    %v181 = vtanh.pop %v180
    %183 = vset.pattern.permute.xlu0 22
    %184 = vperm.xlu0 %183, %v181
    %v185 = vpop.permute.xlu0 %184
    %v187 = vrot.slane %v121, 6
    %v189 = vmul.f32 %v185, %v187
    %v190 = vadd.f32 %v180, %v189
    %v191 = vtanh.pop %v190
    %193 = vset.pattern.permute.xlu0 23
    %194 = vperm.xlu0 %193, %v191
    %v195 = vpop.permute.xlu0 %194
    %v197 = vrot.slane %v121, 7
    %v199 = vmul.f32 %v195, %v197
    %v200 = vadd.f32 %v190, %v199
    %vm201 = vcmask 122880
    %202 = vst.msk [vmem:[#allocation6] sm:$0x1] %vm201, %v200
    // Predicated region
    $region26: #{tpu_custom_call.1} parent=1 // pred_check
      _
    $region27: #{tpu_custom_call.1} parent=1 // pred_check_branch
      %204 = sbr.rel (0) target = $region29
    $region28: #{tpu_custom_call.1} parent=1 // pred_region
      %s206 = ssub.s32 16, 16
      %207 = vsyncadd [#allocation5], %s206
      %s209 = sshll.u32 [#allocation6], 4
      %s210 = int_to_ptr.vmem [resolvable:$true] %s209
      %212 = dma.vmem_to_hbm [thread:$0]  %s210, 16, %s5, [#allocation5]
    $region29: #{tpu_custom_call.1} parent=1 // pred_fallthru
      _
    // Predicated region
    $region30: #{tpu_custom_call.1} parent=1 // pred_check
      _
    $region31: #{tpu_custom_call.1} parent=1 // pred_check_branch
      %214 = sbr.rel (0) target = $region33
    $region32: #{tpu_custom_call.1} parent=1 // pred_region
      %215 = dma.done [#allocation5], 16
    $region33: #{tpu_custom_call.1} parent=1 // pred_fallthru
      _
    %216 = vsyncpa [#allocation4], 1
    %217 = vsyncpa [#allocation5], 1

</llo_original>
